<compile_context>
chip_gen: v6e
topology: v6e:2x2x1
jax: 0.10.0
libtpu: 0.0.40
codegen_flags: <defaults>
</compile_context>

<pallas_src>
import functools

import numpy as np
import jax
import jax.numpy as jnp
from jax.experimental import pallas as pl
from jax.experimental.pallas import tpu as pltpu


def _round_up(a, b):
    return ((a + b - 1) // b) * b


# ----------------------------------------------------------------------------
# Deterministic mel filter bank (numpy port of librosa.filters.mel, slaney
# norm, htk=False) -- replaces the librosa call in __init__.
# ----------------------------------------------------------------------------
def _hz_to_mel(f):
    f = np.asarray(f, dtype=np.float64)
    f_sp = 200.0 / 3.0
    mels = f / f_sp
    min_log_hz = 1000.0
    min_log_mel = min_log_hz / f_sp
    logstep = np.log(6.4) / 27.0
    return np.where(
        f >= min_log_hz,
        min_log_mel + np.log(np.maximum(f, 1e-12) / min_log_hz) / logstep,
        mels,
    )


def _mel_to_hz(m):
    m = np.asarray(m, dtype=np.float64)
    f_sp = 200.0 / 3.0
    freqs = f_sp * m
    min_log_hz = 1000.0
    min_log_mel = min_log_hz / f_sp
    logstep = np.log(6.4) / 27.0
    return np.where(
        m >= min_log_mel,
        min_log_hz * np.exp(logstep * (m - min_log_mel)),
        freqs,
    )


def mel_filter_bank(sr, n_fft, n_mels, fmin, fmax):
    n_freqs = n_fft // 2 + 1
    fftfreqs = np.linspace(0.0, sr / 2.0, n_freqs)
    mel_pts = _mel_to_hz(np.linspace(_hz_to_mel(fmin), _hz_to_mel(fmax), n_mels + 2))
    fdiff = np.diff(mel_pts)
    ramps = mel_pts[:, None] - fftfreqs[None, :]
    weights = np.zeros((n_mels, n_freqs), dtype=np.float64)
    for i in range(n_mels):
        lower = -ramps[i] / fdiff[i]
        upper = ramps[i + 2] / fdiff[i + 1]
        weights[i] = np.maximum(0.0, np.minimum(lower, upper))
    enorm = 2.0 / (mel_pts[2: n_mels + 2] - mel_pts[:n_mels])
    weights *= enorm[:, None]
    return weights.astype(np.float32)  # (n_mels, n_freqs)


# ----------------------------------------------------------------------------
# Kernel 1: mel matmul + power_to_db (clamp to amin, 10*log10, ref offset),
# plus per-tile column maxima emitted as an (8, M) block per grid step.
# No cross-grid accumulator -> the grid axis stays "parallel".
# ----------------------------------------------------------------------------
def _mel_logdb_kernel(x_ref, w_ref, out_ref, colmax_ref, *, is_log, amin, db_offset):
    # x_ref: (tm, F) [compute dtype], w_ref: (F, M), out_ref: (tm, M) f32,
    # colmax_ref: (8, M) f32 per-tile maxima (broadcast over sublanes).
    mel = jnp.dot(x_ref[...], w_ref[...], preferred_element_type=jnp.float32)
    if is_log:
        y = 10.0 * jnp.log10(jnp.maximum(mel, amin)) - db_offset
    else:
        y = mel
    out_ref[...] = y
    tile_max = jnp.max(y, axis=0, keepdims=True)              # (1, M)
    colmax_ref[...] = jnp.broadcast_to(tile_max, colmax_ref.shape)


# ----------------------------------------------------------------------------
# Kernel 2: dynamic-range clamp  out = max(log_spec, global_max - top_db).
# Runs on a lane-dense reshaped slab; threshold scalar arrives in SMEM.
# ----------------------------------------------------------------------------
def _clamp_kernel(thr_ref, y_ref, out_ref):
    out_ref[...] = jnp.maximum(y_ref[...], thr_ref[0, 0])


# ----------------------------------------------------------------------------
# Wrapper reproducing LogmelFilterBank.forward
# ----------------------------------------------------------------------------
def logmel_filterbank(x, melW, *, is_log=True, ref=1.0, amin=1e-10, top_db=80.0,
                      block_rows=1024, compute_dtype=jnp.bfloat16):
    B, C, T, F = x.shape
    Fm, M = melW.shape
    assert F == Fm
    N = B * C * T

    # Effective tile height: multiple of 8, no larger than the (padded) row count.
    block_rows_eff = max(8, min(_round_up(block_rows, 8), _round_up(N, 8)))
    N_pad = _round_up(N, block_rows_eff)
    num_tiles = N_pad // block_rows_eff

    x2 = x.reshape(N, F).astype(compute_dtype)
    if N_pad != N:
        # Zero rows -> mel=0 -> clamped to amin -> global dB minimum, so they
        # can never perturb the column maxima; sliced off at the end.
        x2 = jnp.pad(x2, ((0, N_pad - N), (0, 0)))
    w = melW.astype(compute_dtype)

    db_offset = float(10.0 * np.log10(np.maximum(amin, ref)))

    # Only raise the scoped-VMEM limit when the tile footprint actually needs
    # it (v5e default scope is 16 MiB); leave the default otherwise.
    in_bytes = np.dtype(compute_dtype).itemsize
    f_lanes = _round_up(F, 128)
    m_lanes = _round_up(M, 128)
    vmem_est = 2 * (block_rows_eff * f_lanes * in_bytes      # x tile
                    + _round_up(F, 8) * m_lanes * in_bytes   # melW
                    + block_rows_eff * m_lanes * 4           # out tile
                    + 8 * m_lanes * 4)                       # colmax tile
    cp_kwargs = dict(dimension_semantics=("parallel",))
    if vmem_est > 12 * 1024 * 1024:
        cp_kwargs["vmem_limit_bytes"] = int(vmem_est * 3 // 2) + (2 << 20)

    kernel1 = functools.partial(
        _mel_logdb_kernel, is_log=is_log, amin=float(amin), db_offset=db_offset)

    log_spec, colmax = pl.pallas_call(
        kernel1,
        out_shape=(
            jax.ShapeDtypeStruct((N_pad, M), jnp.float32),
            jax.ShapeDtypeStruct((num_tiles * 8, M), jnp.float32),
        ),
        grid=(num_tiles,),
        in_specs=[
            pl.BlockSpec((block_rows_eff, F), lambda i: (i, 0)),
            pl.BlockSpec((F, M), lambda i: (0, 0)),
        ],
        out_specs=(
            pl.BlockSpec((block_rows_eff, M), lambda i: (i, 0)),
            pl.BlockSpec((8, M), lambda i: (i, 0)),
        ),
        compiler_params=pltpu.CompilerParams(**cp_kwargs),
    )(x2, w)

    if not is_log:
        return log_spec[:N].reshape(B, C, T, M)

    if top_db is not None:
        if top_db < 0:
            raise ValueError("top_db must be non-negative")
        # Tiny (num_tiles*8, M) max-reduce to a scalar threshold in plain JAX.
        thr = (jnp.max(colmax) - top_db).reshape(1, 1).astype(jnp.float32)

        # Lane-dense layout for the elementwise clamp: each grid step handles
        # one matmul tile's worth of data with a wide (>=128) last dim.
        tile_elems = block_rows_eff * M
        lane = None
        for cand in (2048, 1024, 512, 256, 128):
            if tile_elems % cand == 0 and (tile_elems // cand) % 8 == 0:
                lane = cand
                break
        if lane is None:
            lane, tile_r = M, block_rows_eff
        else:
            tile_r = tile_elems // lane
        y_flat = log_spec.reshape(num_tiles * tile_r, lane)

        out_flat = pl.pallas_call(
            _clamp_kernel,
            out_shape=jax.ShapeDtypeStruct(y_flat.shape, jnp.float32),
            grid=(num_tiles,),
            in_specs=[
                pl.BlockSpec(memory_space=pltpu.SMEM),            # threshold scalar
                pl.BlockSpec((tile_r, lane), lambda i: (i, 0)),
            ],
            out_specs=pl.BlockSpec((tile_r, lane), lambda i: (i, 0)),
            input_output_aliases={1: 0},                          # clamp in place
            compiler_params=pltpu.CompilerParams(dimension_semantics=("parallel",)),
        )(thr, y_flat)
        out = out_flat.reshape(N_pad, M)
    else:
        out = log_spec

    return out[:N].reshape(B, C, T, M)


# ----------------------------------------------------------------------------
# Pure-JAX reference (mirrors the PyTorch forward) for validation.
# ----------------------------------------------------------------------------
def logmel_ref(x, melW, is_log=True, ref=1.0, amin=1e-10, top_db=80.0):
    mel = jnp.einsum("bctf,fm->bctm", x, melW)
    if not is_log:
        return mel
    log_spec = 10.0 * jnp.log10(jnp.clip(mel, amin, None))
    log_spec = log_spec - 10.0 * np.log10(np.maximum(amin, ref))
    if top_db is not None:
        log_spec = jnp.clip(log_spec, jnp.max(log_spec) - top_db, None)
    return log_spec


if __name__ == "__main__":
    # Small shapes: batch=2, channels=4, time_steps=16, n_fft=256 -> 129 bins.
    B, C, T = 2, 4, 16
    sr, n_fft, n_mels, fmin, fmax = 16000, 256, 64, 50, 7000
    F = n_fft // 2 + 1

    # Deterministic parameter init (melW) -- same shape as the nn.Parameter.
    melW = jnp.asarray(mel_filter_bank(sr, n_fft, n_mels, fmin, fmax).T)  # (F, n_mels)

    key = jax.random.PRNGKey(0)
    # Non-negative input, like a power spectrogram.
    x = jax.random.normal(key, (B, C, T, F), dtype=jnp.float32) ** 2

    ref_out = jax.block_until_ready(logmel_ref(x, melW))

    # f32 compute path with a multi-tile grid (exercises padding-free 2-tile
    # colmax + clamp): tight tolerance.
    fn_f32 = jax.jit(functools.partial(
        logmel_filterbank, is_log=True, ref=1.0, amin=1e-10, top_db=80.0,
        block_rows=64, compute_dtype=jnp.float32))
    out_f32 = jax.block_until_ready(fn_f32(x, melW))
    assert out_f32.shape == (B, C, T, n_mels)
    np.testing.assert_allclose(np.asarray(out_f32), np.asarray(ref_out),
                               rtol=1e-2, atol=1e-2)

    # Default perf path: large tiles + bf16 matmul inputs (accuracy-gated;
    # ~0.02-0.04 dB error), f32 accumulation and log/clamp.
    fn_fast = jax.jit(functools.partial(
        logmel_filterbank, is_log=True, ref=1.0, amin=1e-10, top_db=80.0))
    out_fast = jax.block_until_ready(fn_fast(x, melW))
    assert out_fast.shape == (B, C, T, n_mels)
    np.testing.assert_allclose(np.asarray(out_fast), np.asarray(ref_out),
                               rtol=2e-2, atol=1e-1)

    print("KERNEL_OK")
</pallas_src>

<mosaic_0001>
module attributes {stable_mosaic.version = 11 : i64} {
  func.func @_mel_logdb_kernel(%arg0: i32, %arg1: memref<64x129xf32, #tpu.memory_space<vmem>>, %arg2: memref<129x64xf32, #tpu.memory_space<vmem>>, %arg3: memref<64x64xf32, #tpu.memory_space<vmem>>, %arg4: memref<8x64xf32, #tpu.memory_space<vmem>>) attributes {dimension_semantics = [#tpu.dimension_semantics<parallel>], iteration_bounds = array<i64: 2>, scalar_prefetch = 0 : i64, scratch_operands = 0 : i64, tpu.core_type = #tpu.core_type<tc>, window_params = [{transform_indices = @transform_0, window_bounds = array<i64: 64, 129>}, {pipeline_mode = #tpu.pipeline_mode<synchronous>, transform_indices = @transform_1, window_bounds = array<i64: 129, 64>}, {transform_indices = @transform_2, window_bounds = array<i64: 64, 64>}, {transform_indices = @transform_3, window_bounds = array<i64: 8, 64>}]} {
    %c0 = arith.constant 0 : index
    %c0_0 = arith.constant 0 : index
    %0 = vector.load %arg1[%c0, %c0_0] : memref<64x129xf32, #tpu.memory_space<vmem>>, vector<64x129xf32>
    %c0_1 = arith.constant 0 : index
    %c0_2 = arith.constant 0 : index
    %1 = vector.load %arg2[%c0_1, %c0_2] : memref<129x64xf32, #tpu.memory_space<vmem>>, vector<129x64xf32>
    %cst = arith.constant dense<0.000000e+00> : vector<64x64xf32>
    %2 = tpu.matmul %0, %1, %cst {dimension_numbers = #tpu.dot_dimension_numbers<[1], [0], [0], [1], [0, 0, 1, 1], [], []>} : vector<64x129xf32>, vector<129x64xf32>, vector<64x64xf32> -> vector<64x64xf32>
    %cst_3 = arith.constant 1.000000e-10 : f32
    %3 = vector.broadcast %cst_3 : f32 to vector<64x64xf32>
    %4 = arith.maximumf %2, %3 : vector<64x64xf32>
    %5 = math.log %4 : vector<64x64xf32>
    %cst_4 = arith.constant 0.434294492 : f32
    %6 = vector.broadcast %cst_4 : f32 to vector<64x64xf32>
    %7 = arith.mulf %5, %6 : vector<64x64xf32>
    %cst_5 = arith.constant 1.000000e+01 : f32
    %8 = vector.broadcast %cst_5 : f32 to vector<64x64xf32>
    %9 = arith.mulf %8, %7 : vector<64x64xf32>
    %cst_6 = arith.constant 0.000000e+00 : f32
    %10 = vector.broadcast %cst_6 : f32 to vector<64x64xf32>
    %11 = arith.subf %9, %10 : vector<64x64xf32>
    %c0_7 = arith.constant 0 : index
    %c0_8 = arith.constant 0 : index
    %12 = vector.load %arg3[%c0_7, %c0_8] : memref<64x64xf32, #tpu.memory_space<vmem>>, vector<64x64xf32>
    tpu.vector_store %arg3[%c0_7, %c0_8], %11 {strides = array<i32>} : memref<64x64xf32, #tpu.memory_space<vmem>>, vector<64x64xf32>,
    %cst_9 = arith.constant dense<0xFF800000> : vector<64xf32>
    %13 = vector.multi_reduction <maximumf>, %11, %cst_9 [0] : vector<64x64xf32> to vector<64xf32>
    %14 = vector.shape_cast %13 : vector<64xf32> to vector<1x64xf32>
    %15 = vector.shape_cast %14 : vector<1x64xf32> to vector<1x64xf32>
    %16 = vector.broadcast %15 : vector<1x64xf32> to vector<8x64xf32>
    %c0_10 = arith.constant 0 : index
    %c0_11 = arith.constant 0 : index
    %17 = vector.load %arg4[%c0_10, %c0_11] : memref<8x64xf32, #tpu.memory_space<vmem>>, vector<8x64xf32>
    tpu.vector_store %arg4[%c0_10, %c0_11], %16 {strides = array<i32>} : memref<8x64xf32, #tpu.memory_space<vmem>>, vector<8x64xf32>,
    return
  }
  func.func @transform_0(%arg0: i32) -> (i32, i32) {
    %c0_i32 = arith.constant 0 : i32
    %c0_i32_0 = arith.constant 0 : i32
    return %arg0, %c0_i32 : i32, i32
  }
  func.func @transform_1(%arg0: i32) -> (i32, i32) {
    %c0_i32 = arith.constant 0 : i32
    %c0_i32_0 = arith.constant 0 : i32
    %c0_i32_1 = arith.constant 0 : i32
    return %c0_i32, %c0_i32_0 : i32, i32
  }
  func.func @transform_2(%arg0: i32) -> (i32, i32) {
    %c0_i32 = arith.constant 0 : i32
    %c0_i32_0 = arith.constant 0 : i32
    return %arg0, %c0_i32 : i32, i32
  }
  func.func @transform_3(%arg0: i32) -> (i32, i32) {
    %c0_i32 = arith.constant 0 : i32
    %c0_i32_0 = arith.constant 0 : i32
    return %arg0, %c0_i32 : i32, i32
  }
}

module attributes {stable_mosaic.version = 11 : i64} {
  func.func @_clamp_kernel(%arg0: i32, %arg1: memref<1x1xf32, #tpu.memory_space<smem>>, %arg2: memref<8x512xf32, #tpu.memory_space<vmem>>, %arg3: memref<8x512xf32, #tpu.memory_space<vmem>>) attributes {dimension_semantics = [#tpu.dimension_semantics<parallel>], iteration_bounds = array<i64: 2>, scalar_prefetch = 0 : i64, scratch_operands = 0 : i64, tpu.core_type = #tpu.core_type<tc>, window_params = [{transform_indices = @transform_0, window_bounds = array<i64: 1, 1>}, {transform_indices = @transform_1, window_bounds = array<i64: 8, 512>}, {transform_indices = @transform_2, window_bounds = array<i64: 8, 512>}]} {
    %c0 = arith.constant 0 : index
    %c0_0 = arith.constant 0 : index
    %0 = vector.load %arg2[%c0, %c0_0] : memref<8x512xf32, #tpu.memory_space<vmem>>, vector<8x512xf32>
    %c0_1 = arith.constant 0 : index
    %c0_2 = arith.constant 0 : index
    %1 = memref.load %arg1[%c0_1, %c0_2] : memref<1x1xf32, #tpu.memory_space<smem>>
    %2 = vector.broadcast %1 : f32 to vector<8x512xf32>
    %3 = arith.maximumf %0, %2 : vector<8x512xf32>
    %c0_3 = arith.constant 0 : index
    %c0_4 = arith.constant 0 : index
    %4 = vector.load %arg3[%c0_3, %c0_4] : memref<8x512xf32, #tpu.memory_space<vmem>>, vector<8x512xf32>
    tpu.vector_store %arg3[%c0_3, %c0_4], %3 {strides = array<i32>} : memref<8x512xf32, #tpu.memory_space<vmem>>, vector<8x512xf32>,
    return
  }
  func.func @transform_0(%arg0: i32) -> (i32, i32) {
    %c0_i32 = arith.constant 0 : i32
    %c0_i32_0 = arith.constant 0 : i32
    %c0_i32_1 = arith.constant 0 : i32
    return %c0_i32, %c0_i32_0 : i32, i32
  }
  func.func @transform_1(%arg0: i32) -> (i32, i32) {
    %c0_i32 = arith.constant 0 : i32
    %c0_i32_0 = arith.constant 0 : i32
    return %arg0, %c0_i32 : i32, i32
  }
  func.func @transform_2(%arg0: i32) -> (i32, i32) {
    %c0_i32 = arith.constant 0 : i32
    %c0_i32_0 = arith.constant 0 : i32
    return %arg0, %c0_i32 : i32, i32
  }
}

</mosaic_0001>

<llo_original>
// kernel: logmel_filterbank.3
$region0: #{logmel_filterbank.3}
  #allocation0 [shape = 'u32[]', space=smem, size = 0x4, offset = 0x4, fixed_abs, tag = 'smem constant byte address 0x4 - core index']
  #allocation1 [shape = 'u32[144,128]{1,0:T(1,128)}', space=vmem, size = 0x12000, scoped, tag = 'internal scratch']
  #allocation2 [shape = 'f32[1,1]{1,0:T(1,128)S(6)}', space=smem, size = 0x200, scoped, tag = 'scoped memory for logmel_filterbank.3']
  %s0 = inlined_call_operand.<no memory space> [shape: f32[1,1], index: 0, kind: input, shape index: {}]
  %s1 = inlined_call_operand.vmem [shape: f32[16,512], index: 1, kind: input, shape index: {}, may-alias: {1,2}]
  %s2 = inlined_call_operand.vmem [shape: f32[16,512], index: 2, kind: output, shape index: {}, may-alias: {1,2}]
  %s3 = sld [smem:[#allocation0]]
  $region41: #{logmel_filterbank.3} parent=0
    _
  %s5 = ssub.s32 1, %s3
  %s6 = scalar_select 0, %s5, %s3
  %7 = sst [smem:[#allocation2]] %s0
  loop: start=0, step=1, limit=4
  $region2: #{logmel_filterbank.3} parent=0 // loop_pre_header
    _
  $region3: #{logmel_filterbank.3} parent=0 // loop_header
    %s9 = sphi 0, %s13
    %p10 = scmp.ge.s32.totalorder %s9, 4
    %s17 = sphi 0, %s17
    %s19 = sphi 0, %s17
    %s20 = sphi 0, %s19
    %s34 = sphi 0, %s20
    %s40 = sphi 0, %s42
    %s43 = sphi 0, %s40
    %s44 = sphi 0, %s43
    %s60 = sphi 0, %s44
    %s66 = sphi 0, %s68
    %s69 = sphi 0, %s66
    %s70 = sphi 0, %s69
    %s86 = sphi 0, %s70
  $region4: #{logmel_filterbank.3} parent=0 // loop_header_branch
    %12 = sbr.rel (%p10) target = $region8
  $region5: #{logmel_filterbank.3} parent=0 // loop_body
    %s14 = ssub.s32 %s9, 1
    %s15 = ssub.s32 %s9, 2
    %s16 = sadd.s32 %s9, 1
    %s18 = sadd.s32 %s17, 1
    %p21 = scmp.eq.s32.totalorder %s9, 1
    %p22 = scmp.ne.s32.totalorder %s17, %s19
    %p23 = scmp.eq.s32.totalorder %s9, 0
    %p24 = por %p22, %p23
    %p25 = scmp.ne.s32.totalorder %s17, %s19
    %p26 = scmp.eq.s32.totalorder %s14, 1
    %p27 = por %p25, %p26
    %p28 = scmp.ne.s32.totalorder %s19, %s20
    %p29 = scmp.eq.s32.totalorder %s14, 0
    %p30 = por %p28, %p29
    %p31 = scmp.ne.s32.totalorder %s19, %s20
    %p32 = scmp.eq.s32.totalorder %s15, 1
    %p33 = por %p31, %p32
    %p35 = scmp.ne.s32.totalorder %s20, %s34
    %p36 = scmp.eq.s32.totalorder %s15, 0
    %p37 = por %p35, %p36
    %s38 = ssub.s32 %s9, %s16
    %p39 = scmp.eq.s32.totalorder %s38, 0
    %s41 = sadd.s32 %s40, 1
    %s42 = scalar_select %p39, %s40, %s41
    %p45 = pneg %p39
    %p46 = scmp.eq.s32.totalorder %s9, 1
    %p47 = por %p45, %p46
    %p48 = scmp.ne.s32.totalorder %s40, %s43
    %p49 = scmp.eq.s32.totalorder %s9, 0
    %p50 = por %p48, %p49
    %p51 = scmp.ne.s32.totalorder %s40, %s43
    %p52 = scmp.eq.s32.totalorder %s14, 1
    %p53 = por %p51, %p52
    %p54 = scmp.ne.s32.totalorder %s43, %s44
    %p55 = scmp.eq.s32.totalorder %s14, 0
    %p56 = por %p54, %p55
    %p57 = scmp.ne.s32.totalorder %s43, %s44
    %p58 = scmp.eq.s32.totalorder %s15, 1
    %p59 = por %p57, %p58
    %p61 = scmp.ne.s32.totalorder %s44, %s60
    %p62 = scmp.eq.s32.totalorder %s15, 0
    %p63 = por %p61, %p62
    %s64 = ssub.s32 %s9, %s16
    %p65 = scmp.eq.s32.totalorder %s64, 0
    %s67 = sadd.s32 %s66, 1
    %s68 = scalar_select %p65, %s66, %s67
    %p71 = pneg %p65
    %p72 = scmp.eq.s32.totalorder %s9, 1
    %p73 = por %p71, %p72
    %p74 = scmp.ne.s32.totalorder %s66, %s69
    %p75 = scmp.eq.s32.totalorder %s9, 0
    %p76 = por %p74, %p75
    %p77 = scmp.ne.s32.totalorder %s66, %s69
    %p78 = scmp.eq.s32.totalorder %s14, 1
    %p79 = por %p77, %p78
    %p80 = scmp.ne.s32.totalorder %s69, %s70
    %p81 = scmp.eq.s32.totalorder %s14, 0
    %p82 = por %p80, %p81
    %p83 = scmp.ne.s32.totalorder %s69, %s70
    %p84 = scmp.eq.s32.totalorder %s15, 1
    %p85 = por %p83, %p84
    %p87 = scmp.ne.s32.totalorder %s70, %s86
    %p88 = scmp.eq.s32.totalorder %s15, 0
    %p89 = por %p87, %p88
    %p90 = scmp.le.s32.totalorder 1, %s9
    %p91 = scmp.lt.s32.totalorder %s9, 3
    %p92 = pnand %p90, %p91
    %p93 = pneg %p92
    // Predicated region
    $region9: #{logmel_filterbank.3} parent=5 // pred_check
      _
    $region10: #{logmel_filterbank.3} parent=5 // pred_check_branch
      %95 = sbr.rel (%p92) target = $region12
    $region11: #{logmel_filterbank.3} parent=5 // pred_region
      %s96 = ssub.s32 %s9, 1
      // Predicated region
      $region13: #{logmel_filterbank.3} parent=11 // pred_check
        %p97 = pneg %p30
      $region14: #{logmel_filterbank.3} parent=11 // pred_check_branch
        %99 = sbr.rel (%p97) target = $region16
      $region15: #{logmel_filterbank.3} parent=11 // pred_region
        _
      $region16: #{logmel_filterbank.3} parent=11 // pred_fallthru
        _
    $region12: #{logmel_filterbank.3} parent=5 // pred_fallthru
      _
    %p100 = scmp.lt.s32.totalorder %s9, 2
    // Predicated region
    $region17: #{logmel_filterbank.3} parent=5 // pred_check
      %p101 = pneg %p100
    $region18: #{logmel_filterbank.3} parent=5 // pred_check_branch
      %103 = sbr.rel (%p101) target = $region20
    $region19: #{logmel_filterbank.3} parent=5 // pred_region
      // Predicated region
      $region21: #{logmel_filterbank.3} parent=19 // pred_check
        %p104 = pneg %p50
      $region22: #{logmel_filterbank.3} parent=19 // pred_check_branch
        %106 = sbr.rel (%p104) target = $region24
      $region23: #{logmel_filterbank.3} parent=19 // pred_region
        %p107 = scmp.lt.s32.totalorder %s9, 1
        %s108 = scalar_select %p107, %s9, 1
        %s109 = smul.addr %s108, 4
        %s110 = smul.addr %s109, 8
        %s111 = scalar_lea.vmem %s1, %s110
      $region24: #{logmel_filterbank.3} parent=19 // pred_fallthru
        _
    $region20: #{logmel_filterbank.3} parent=5 // pred_fallthru
      _
    %p112 = scmp.le.s32.totalorder 1, %s9
    %p113 = scmp.lt.s32.totalorder %s9, 3
    %p114 = pnand %p112, %p113
    %p115 = pneg %p114
    // Predicated region
    $region25: #{logmel_filterbank.3} parent=5 // pred_check
      _
    $region26: #{logmel_filterbank.3} parent=5 // pred_check_branch
      %117 = sbr.rel (%p114) target = $region28
    $region27: #{logmel_filterbank.3} parent=5 // pred_region
      %s118 = ssub.s32 %s9, 1
      %p119 = pneg %p30
      %p120 = pneg %p27
      %p121 = scmp.lt.s32.totalorder %s14, 1
      %s122 = scalar_select %p121, %s14, 1
      %s123 = smul.addr %s122, 4
      %s124 = smul.addr %s123, 8
      %s125 = scalar_lea.vmem %s1, %s124
      %p126 = pneg %p56
      %p127 = pneg %p53
      %p128 = pneg %p82
      %p129 = pneg %p79
      %p130 = scmp.lt.s32.totalorder %s14, 1
      %s131 = scalar_select %p130, %s14, 1
      %s132 = smul.addr %s131, 4
      %s133 = smul.addr %s132, 8
      %s134 = scalar_lea.vmem %s2, %s133
      %p135 = scmp.lt.s32.totalorder %s14, 1
      %s136 = scalar_select %p135, %s14, 1
      %s137 = smul.addr %s136, 4
      %s138 = smul.addr %s137, 8
      %s139 = scalar_lea.vmem %s1, %s138
      %p140 = scmp.lt.s32.totalorder %s14, 1
      %s141 = scalar_select %p140, %s14, 1
      %s142 = smul.addr %s141, 4
      %s143 = smul.addr %s142, 8
      %s144 = scalar_lea.vmem %s2, %s143
      %v145 = vld [vmem:[%s139] sm:$0xff]
      %v146 = vld [vmem:[%s139 + $0x8] sm:$0xff]
      %v147 = vld [vmem:[%s139 + $0x10] sm:$0xff]
      %v148 = vld [vmem:[%s139 + $0x18] sm:$0xff]
      %s149 = sld [smem:[#allocation2]]
      %v150 = vstv %s149
      %v151 = vmax.f32 %v145, %v150
      %v152 = vmax.f32 %v146, %v150
      %v153 = vmax.f32 %v147, %v150
      %v154 = vmax.f32 %v148, %v150
      %155 = vst [vmem:[%s144] sm:$0xff] %v151
      %156 = vst [vmem:[%s144 + $0x8] sm:$0xff] %v152
      %157 = vst [vmem:[%s144 + $0x10] sm:$0xff] %v153
      %158 = vst [vmem:[%s144 + $0x18] sm:$0xff] %v154
      %p159 = scmp.lt.s32.totalorder %s14, 1
      %s160 = scalar_select %p159, %s14, 1
      %s161 = smul.addr %s160, 4
      %s162 = smul.addr %s161, 8
      %s163 = scalar_lea.vmem %s2, %s162
      // Predicated region
      $region29: #{logmel_filterbank.3} parent=27 // pred_check
        %p164 = pneg %p79
      $region30: #{logmel_filterbank.3} parent=27 // pred_check_branch
        %166 = sbr.rel (%p164) target = $region32
      $region31: #{logmel_filterbank.3} parent=27 // pred_region
        _
      $region32: #{logmel_filterbank.3} parent=27 // pred_fallthru
        _
    $region28: #{logmel_filterbank.3} parent=5 // pred_fallthru
      _
    %p167 = scmp.le.s32.totalorder 2, %s9
    // Predicated region
    $region33: #{logmel_filterbank.3} parent=5 // pred_check
      %p168 = pneg %p167
    $region34: #{logmel_filterbank.3} parent=5 // pred_check_branch
      %170 = sbr.rel (%p168) target = $region36
    $region35: #{logmel_filterbank.3} parent=5 // pred_region
      %s171 = ssub.s32 %s9, 2
      // Predicated region
      $region37: #{logmel_filterbank.3} parent=35 // pred_check
        %p172 = pneg %p85
      $region38: #{logmel_filterbank.3} parent=35 // pred_check_branch
        %174 = sbr.rel (%p172) target = $region40
      $region39: #{logmel_filterbank.3} parent=35 // pred_region
        %p175 = scmp.lt.s32.totalorder %s15, 1
        %s176 = scalar_select %p175, %s15, 1
        %s177 = smul.addr %s176, 4
        %s178 = smul.addr %s177, 8
        %s179 = scalar_lea.vmem %s2, %s178
      $region40: #{logmel_filterbank.3} parent=35 // pred_fallthru
        _
    $region36: #{logmel_filterbank.3} parent=5 // pred_fallthru
      _
  $region6: #{logmel_filterbank.3} parent=0 // loop_footer
    %s13 = sadd.s32 1, %s9
  $region7: #{logmel_filterbank.3} parent=0 // loop_footer_branch
    %8 = sbr.rel target = $region3
  $region8: #{logmel_filterbank.3} parent=0 // loop_exit
    _

// kernel: logmel_filterbank.2
$region0: #{logmel_filterbank.2}
  #allocation0 [shape = 'u32[]', space=smem, size = 0x4, offset = 0x4, fixed_abs, tag = 'smem constant byte address 0x4 - core index']
  #allocation1 [shape = 'u32[144,128]{1,0:T(1,128)}', space=vmem, size = 0x12000, scoped, tag = 'internal scratch']
  %s0 = inlined_call_operand.vmem [shape: f32[128,129], index: 0, kind: input, shape index: {}]
  %s1 = inlined_call_operand.vmem [shape: f32[129,64], index: 1, kind: input, shape index: {}]
  %s2 = inlined_call_operand.vmem [shape: f32[128,64], index: 2, kind: output, shape index: {0}]
  %s3 = inlined_call_operand.vmem [shape: f32[16,64], index: 3, kind: output, shape index: {1}]
  %4 = xla_tuple %s2, %s3
  %s5 = sld [smem:[#allocation0]]
  $region49: #{logmel_filterbank.2} parent=0
    _
  %s7 = ssub.s32 1, %s5
  %s8 = scalar_select 0, %s7, %s5
  loop: start=0, step=1, limit=4
  $region2: #{logmel_filterbank.2} parent=0 // loop_pre_header
    _
  $region3: #{logmel_filterbank.2} parent=0 // loop_header
    %s10 = sphi 0, %s14
    %p11 = scmp.ge.s32.totalorder %s10, 4
    %s20 = sphi 0, %s22
    %s23 = sphi 0, %s20
    %s24 = sphi 0, %s23
    %s40 = sphi 0, %s24
    %s44 = sphi 0, %s44
    %s46 = sphi 0, %s44
    %s47 = sphi 0, %s46
    %s61 = sphi 0, %s47
    %s67 = sphi 0, %s69
    %s70 = sphi 0, %s67
    %s71 = sphi 0, %s70
    %s87 = sphi 0, %s71
    %s93 = sphi 0, %s95
    %s96 = sphi 0, %s93
    %s97 = sphi 0, %s96
    %s113 = sphi 0, %s97
  $region4: #{logmel_filterbank.2} parent=0 // loop_header_branch
    %13 = sbr.rel (%p11) target = $region8
  $region5: #{logmel_filterbank.2} parent=0 // loop_body
    %s15 = ssub.s32 %s10, 1
    %s16 = ssub.s32 %s10, 2
    %s17 = sadd.s32 %s10, 1
    %s18 = ssub.s32 %s10, %s17
    %p19 = scmp.eq.s32.totalorder %s18, 0
    %s21 = sadd.s32 %s20, 1
    %s22 = scalar_select %p19, %s20, %s21
    %p25 = pneg %p19
    %p26 = scmp.eq.s32.totalorder %s10, 1
    %p27 = por %p25, %p26
    %p28 = scmp.ne.s32.totalorder %s20, %s23
    %p29 = scmp.eq.s32.totalorder %s10, 0
    %p30 = por %p28, %p29
    %p31 = scmp.ne.s32.totalorder %s20, %s23
    %p32 = scmp.eq.s32.totalorder %s15, 1
    %p33 = por %p31, %p32
    %p34 = scmp.ne.s32.totalorder %s23, %s24
    %p35 = scmp.eq.s32.totalorder %s15, 0
    %p36 = por %p34, %p35
    %p37 = scmp.ne.s32.totalorder %s23, %s24
    %p38 = scmp.eq.s32.totalorder %s16, 1
    %p39 = por %p37, %p38
    %p41 = scmp.ne.s32.totalorder %s24, %s40
    %p42 = scmp.eq.s32.totalorder %s16, 0
    %p43 = por %p41, %p42
    %s45 = sadd.s32 %s44, 1
    %p48 = scmp.eq.s32.totalorder %s10, 1
    %p49 = scmp.ne.s32.totalorder %s44, %s46
    %p50 = scmp.eq.s32.totalorder %s10, 0
    %p51 = por %p49, %p50
    %p52 = scmp.ne.s32.totalorder %s44, %s46
    %p53 = scmp.eq.s32.totalorder %s15, 1
    %p54 = por %p52, %p53
    %p55 = scmp.ne.s32.totalorder %s46, %s47
    %p56 = scmp.eq.s32.totalorder %s15, 0
    %p57 = por %p55, %p56
    %p58 = scmp.ne.s32.totalorder %s46, %s47
    %p59 = scmp.eq.s32.totalorder %s16, 1
    %p60 = por %p58, %p59
    %p62 = scmp.ne.s32.totalorder %s47, %s61
    %p63 = scmp.eq.s32.totalorder %s16, 0
    %p64 = por %p62, %p63
    %s65 = ssub.s32 %s10, %s17
    %p66 = scmp.eq.s32.totalorder %s65, 0
    %s68 = sadd.s32 %s67, 1
    %s69 = scalar_select %p66, %s67, %s68
    %p72 = pneg %p66
    %p73 = scmp.eq.s32.totalorder %s10, 1
    %p74 = por %p72, %p73
    %p75 = scmp.ne.s32.totalorder %s67, %s70
    %p76 = scmp.eq.s32.totalorder %s10, 0
    %p77 = por %p75, %p76
    %p78 = scmp.ne.s32.totalorder %s67, %s70
    %p79 = scmp.eq.s32.totalorder %s15, 1
    %p80 = por %p78, %p79
    %p81 = scmp.ne.s32.totalorder %s70, %s71
    %p82 = scmp.eq.s32.totalorder %s15, 0
    %p83 = por %p81, %p82
    %p84 = scmp.ne.s32.totalorder %s70, %s71
    %p85 = scmp.eq.s32.totalorder %s16, 1
    %p86 = por %p84, %p85
    %p88 = scmp.ne.s32.totalorder %s71, %s87
    %p89 = scmp.eq.s32.totalorder %s16, 0
    %p90 = por %p88, %p89
    %s91 = ssub.s32 %s10, %s17
    %p92 = scmp.eq.s32.totalorder %s91, 0
    %s94 = sadd.s32 %s93, 1
    %s95 = scalar_select %p92, %s93, %s94
    %p98 = pneg %p92
    %p99 = scmp.eq.s32.totalorder %s10, 1
    %p100 = por %p98, %p99
    %p101 = scmp.ne.s32.totalorder %s93, %s96
    %p102 = scmp.eq.s32.totalorder %s10, 0
    %p103 = por %p101, %p102
    %p104 = scmp.ne.s32.totalorder %s93, %s96
    %p105 = scmp.eq.s32.totalorder %s15, 1
    %p106 = por %p104, %p105
    %p107 = scmp.ne.s32.totalorder %s96, %s97
    %p108 = scmp.eq.s32.totalorder %s15, 0
    %p109 = por %p107, %p108
    %p110 = scmp.ne.s32.totalorder %s96, %s97
    %p111 = scmp.eq.s32.totalorder %s16, 1
    %p112 = por %p110, %p111
    %p114 = scmp.ne.s32.totalorder %s97, %s113
    %p115 = scmp.eq.s32.totalorder %s16, 0
    %p116 = por %p114, %p115
    %p117 = scmp.le.s32.totalorder 1, %s10
    %p118 = scmp.lt.s32.totalorder %s10, 3
    %p119 = pnand %p117, %p118
    %p120 = pneg %p119
    // Predicated region
    $region9: #{logmel_filterbank.2} parent=5 // pred_check
      _
    $region10: #{logmel_filterbank.2} parent=5 // pred_check_branch
      %122 = sbr.rel (%p119) target = $region12
    $region11: #{logmel_filterbank.2} parent=5 // pred_region
      %s123 = ssub.s32 %s10, 1
      // Predicated region
      $region13: #{logmel_filterbank.2} parent=11 // pred_check
        %p124 = pneg %p57
      $region14: #{logmel_filterbank.2} parent=11 // pred_check_branch
        %126 = sbr.rel (%p124) target = $region16
      $region15: #{logmel_filterbank.2} parent=11 // pred_region
        _
      $region16: #{logmel_filterbank.2} parent=11 // pred_fallthru
        _
    $region12: #{logmel_filterbank.2} parent=5 // pred_fallthru
      _
    %p127 = scmp.lt.s32.totalorder %s10, 2
    // Predicated region
    $region17: #{logmel_filterbank.2} parent=5 // pred_check
      %p128 = pneg %p127
    $region18: #{logmel_filterbank.2} parent=5 // pred_check_branch
      %130 = sbr.rel (%p128) target = $region20
    $region19: #{logmel_filterbank.2} parent=5 // pred_region
      // Predicated region
      $region21: #{logmel_filterbank.2} parent=19 // pred_check
        %p131 = pneg %p30
      $region22: #{logmel_filterbank.2} parent=19 // pred_check_branch
        %133 = sbr.rel (%p131) target = $region24
      $region23: #{logmel_filterbank.2} parent=19 // pred_region
        %s134 = smul.u32 8, %s10
        %p135 = scmp.lt.s32.totalorder %s134, 15
        %s136 = scalar_select %p135, %s134, 15
        %s137 = smul.addr %s136, 2
        %s138 = smul.addr %s137, 8
        %s139 = scalar_lea.vmem %s0, %s138
        %s140 = smul.u32 8, %s10
      $region24: #{logmel_filterbank.2} parent=19 // pred_fallthru
        _
    $region20: #{logmel_filterbank.2} parent=5 // pred_fallthru
      _
    %p141 = scmp.le.s32.totalorder 1, %s10
    %p142 = scmp.lt.s32.totalorder %s10, 3
    %p143 = pnand %p141, %p142
    %p144 = pneg %p143
    // Predicated region
    $region25: #{logmel_filterbank.2} parent=5 // pred_check
      _
    $region26: #{logmel_filterbank.2} parent=5 // pred_check_branch
      %146 = sbr.rel (%p143) target = $region28
    $region27: #{logmel_filterbank.2} parent=5 // pred_region
      %s147 = ssub.s32 %s10, 1
      %s148 = smul.u32 8, %s15
      %p149 = scmp.lt.s32.totalorder %s148, 15
      %s150 = scalar_select %p149, %s148, 15
      %s151 = smul.addr %s150, 2
      %s152 = smul.addr %s151, 8
      %s153 = scalar_lea.vmem %s0, %s152
      %p154 = pneg %p36
      %p155 = pneg %p33
      %p156 = pneg %p57
      %p157 = pneg %p54
      %p158 = pneg %p83
      %p159 = pneg %p80
      %s160 = smul.u32 8, %s15
      %p161 = scmp.lt.s32.totalorder %s160, 15
      %s162 = scalar_select %p161, %s160, 15
      %s163 = smul.addr %s162, 8
      %s164 = scalar_lea.vmem %s2, %s163
      %p165 = pneg %p109
      %p166 = pneg %p106
      %p167 = scmp.lt.s32.totalorder %s15, 1
      %s168 = scalar_select %p167, %s15, 1
      %s169 = smul.addr %s168, 8
      %s170 = scalar_lea.vmem %s3, %s169
      %s171 = smul.u32 8, %s15
      %p172 = scmp.lt.s32.totalorder %s171, 15
      %s173 = scalar_select %p172, %s171, 15
      %s174 = smul.addr %s173, 2
      %s175 = smul.addr %s174, 8
      %s176 = scalar_lea.vmem %s0, %s175
      %s177 = smul.u32 8, %s15
      %s178 = smul.u32 8, %s15
      %p179 = scmp.lt.s32.totalorder %s178, 15
      %s180 = scalar_select %p179, %s178, 15
      %s181 = smul.addr %s180, 8
      %s182 = scalar_lea.vmem %s2, %s181
      %s183 = smul.u32 8, %s15
      %p184 = scmp.lt.s32.totalorder %s15, 1
      %s185 = scalar_select %p184, %s15, 1
      %s186 = smul.addr %s185, 8
      %s187 = scalar_lea.vmem %s3, %s186
      %v188 = vld [vmem:[%s176] sm:$0xff]
      %v189 = vld [vmem:[%s176 + $0x8] sm:$0xff]
      %v190 = vld [vmem:[%s176 + $0x10] sm:$0xff]
      %v191 = vld [vmem:[%s176 + $0x18] sm:$0xff]
      %v192 = vld [vmem:[%s176 + $0x20] sm:$0xff]
      %v193 = vld [vmem:[%s176 + $0x28] sm:$0xff]
      %v194 = vld [vmem:[%s176 + $0x30] sm:$0xff]
      %v195 = vld [vmem:[%s176 + $0x38] sm:$0xff]
      %v196 = vld [vmem:[%s176 + $0x40] sm:$0xff]
      %v197 = vld [vmem:[%s176 + $0x48] sm:$0xff]
      %v198 = vld [vmem:[%s176 + $0x50] sm:$0xff]
      %v199 = vld [vmem:[%s176 + $0x58] sm:$0xff]
      %v200 = vld [vmem:[%s176 + $0x60] sm:$0xff]
      %v201 = vld [vmem:[%s176 + $0x68] sm:$0xff]
      %v202 = vld [vmem:[%s176 + $0x70] sm:$0xff]
      %v203 = vld [vmem:[%s176 + $0x78] sm:$0xff]
      %v204 = vld [vmem:[%s1] sm:$0xff]
      %v205 = vld [vmem:[%s1 + $0x8] sm:$0xff]
      %v206 = vld [vmem:[%s1 + $0x10] sm:$0xff]
      %v207 = vld [vmem:[%s1 + $0x18] sm:$0xff]
      %v208 = vld [vmem:[%s1 + $0x20] sm:$0xff]
      %v209 = vld [vmem:[%s1 + $0x28] sm:$0xff]
      %v210 = vld [vmem:[%s1 + $0x30] sm:$0xff]
      %v211 = vld [vmem:[%s1 + $0x38] sm:$0xff]
      %v212 = vld [vmem:[%s1 + $0x40] sm:$0xff]
      %v213 = vld [vmem:[%s1 + $0x48] sm:$0xff]
      %v214 = vld [vmem:[%s1 + $0x50] sm:$0xff]
      %v215 = vld [vmem:[%s1 + $0x58] sm:$0xff]
      %v216 = vld [vmem:[%s1 + $0x60] sm:$0xff]
      %v217 = vld [vmem:[%s1 + $0x68] sm:$0xff]
      %v218 = vld [vmem:[%s1 + $0x70] sm:$0xff]
      %v219 = vld [vmem:[%s1 + $0x78] sm:$0xff]
      %v220 = vld [vmem:[%s1 + $0x80] sm:$0x1]
      %vm221 = vcmask 7168
      %v223 = vsel %vm221, %v189, 0
      %v226 = vsel %vm221, %v191, 0
      %v229 = vsel %vm221, %v193, 0
      %v232 = vsel %vm221, %v195, 0
      %v235 = vsel %vm221, %v197, 0
      %v238 = vsel %vm221, %v199, 0
      %v241 = vsel %vm221, %v201, 0
      %v244 = vsel %vm221, %v203, 0
      %vm246 = vcmask 1040384
      %v248 = vsel %vm246, %v220, 0
      %250 = vmatprep.subr.mxu0 0.0
      %251 = vmatpush1.msra.mxu0 %v219
      %252 = vmatprep.subr.mxu0 0.0
      %253 = vmatpush1.msra.mxu0 %v218
      %254 = vmatprep.subr.mxu0 0.0
      %255 = vmatpush1.msra.mxu0 %v217
      %256 = vmatprep.subr.mxu0 0.0
      %257 = vmatpush1.msra.mxu0 %v216
      %258 = vmatprep.subr.mxu0 0.0
      %259 = vmatpush1.msra.mxu0 %v215
      %260 = vmatprep.subr.mxu0 0.0
      %261 = vmatpush1.msra.mxu0 %v214
      %262 = vmatprep.subr.mxu0 0.0
      %263 = vmatpush1.msra.mxu0 %v213
      %264 = vmatprep.subr.mxu0 0.0
      %265 = vmatpush1.msra.mxu0 %v212
      %266 = vmatprep.subr.mxu0 0.0
      %267 = vmatpush1.msra.mxu0 %v211
      %268 = vmatprep.subr.mxu0 0.0
      %269 = vmatpush1.msra.mxu0 %v210
      %270 = vmatprep.subr.mxu0 0.0
      %271 = vmatpush1.msra.mxu0 %v209
      %272 = vmatprep.subr.mxu0 0.0
      %273 = vmatpush1.msra.mxu0 %v208
      %274 = vmatprep.subr.mxu0 0.0
      %275 = vmatpush1.msra.mxu0 %v207
      %276 = vmatprep.subr.mxu0 0.0
      %277 = vmatpush1.msra.mxu0 %v206
      %278 = vmatprep.subr.mxu0 0.0
      %279 = vmatpush1.msra.mxu0 %v205
      %280 = vmatprep.subr.mxu0 0.0
      %281 = vmatpush1.msra.mxu0 %v204
      %282 = vmatprep.subr.mxu0 0.0
      %283 = vmatpush2.msra.mxu0 0.0
      %284 = vmatprep.subr.mxu0 0.0
      %285 = vmatpush2.msra.mxu0 0.0
      %286 = vmatprep.subr.mxu0 0.0
      %287 = vmatpush2.msra.mxu0 0.0
      %288 = vmatprep.subr.mxu0 0.0
      %289 = vmatpush2.msra.mxu0 0.0
      %290 = vmatprep.subr.mxu0 0.0
      %291 = vmatpush2.msra.mxu0 0.0
      %292 = vmatprep.subr.mxu0 0.0
      %293 = vmatpush2.msra.mxu0 0.0
      %294 = vmatprep.subr.mxu0 0.0
      %295 = vmatpush2.msra.mxu0 0.0
      %296 = vmatprep.subr.mxu0 0.0
      %297 = vmatpush2.msra.mxu0 0.0
      %298 = vmatprep.subr.mxu0 0.0
      %299 = vmatpush2.msra.mxu0 0.0
      %300 = vmatprep.subr.mxu0 0.0
      %301 = vmatpush2.msra.mxu0 0.0
      %302 = vmatprep.subr.mxu0 0.0
      %303 = vmatpush2.msra.mxu0 0.0
      %304 = vmatprep.subr.mxu0 0.0
      %305 = vmatpush2.msra.mxu0 0.0
      %306 = vmatprep.subr.mxu0 0.0
      %307 = vmatpush2.msra.mxu0 0.0
      %308 = vmatprep.subr.mxu0 0.0
      %309 = vmatpush2.msra.mxu0 0.0
      %310 = vmatprep.subr.mxu0 0.0
      %311 = vmatpush2.msra.mxu0 0.0
      %312 = vmatprep.subr.mxu0 0.0
      %313 = vmatpush2.msra.mxu0 %v248
      %314 = vmatprep.mubr.f32.mxu0 %v223
      %315 = vmatmul.mubr.f32.gmra.mxu0 %v188
      %v316 = vpop.f32.mrf.mxu0
      %v317 = vadd.f32 0.0, %v316
      %v318 = vpop.f32.mrf.mxu0
      %319 = vmatprep.mubr.f32.mxu0 %v226
      %320 = vmatmul.mubr.f32.gmra.mxu0 %v190
      %v321 = vpop.f32.mrf.mxu0
      %v322 = vadd.f32 0.0, %v321
      %v323 = vpop.f32.mrf.mxu0
      %324 = vmatprep.mubr.f32.mxu0 %v229
      %325 = vmatmul.mubr.f32.gmra.mxu0 %v192
      %v326 = vpop.f32.mrf.mxu0
      %v327 = vadd.f32 0.0, %v326
      %v328 = vpop.f32.mrf.mxu0
      %329 = vmatprep.mubr.f32.mxu0 %v232
      %330 = vmatmul.mubr.f32.gmra.mxu0 %v194
      %v331 = vpop.f32.mrf.mxu0
      %v332 = vadd.f32 0.0, %v331
      %v333 = vpop.f32.mrf.mxu0
      %334 = vmatprep.mubr.f32.mxu0 %v235
      %335 = vmatmul.mubr.f32.gmra.mxu0 %v196
      %v336 = vpop.f32.mrf.mxu0
      %v337 = vadd.f32 0.0, %v336
      %v338 = vpop.f32.mrf.mxu0
      %339 = vmatprep.mubr.f32.mxu0 %v238
      %340 = vmatmul.mubr.f32.gmra.mxu0 %v198
      %v341 = vpop.f32.mrf.mxu0
      %v342 = vadd.f32 0.0, %v341
      %v343 = vpop.f32.mrf.mxu0
      %344 = vmatprep.mubr.f32.mxu0 %v241
      %345 = vmatmul.mubr.f32.gmra.mxu0 %v200
      %v346 = vpop.f32.mrf.mxu0
      %v347 = vadd.f32 0.0, %v346
      %v348 = vpop.f32.mrf.mxu0
      %349 = vmatprep.mubr.f32.mxu0 %v244
      %350 = vmatmul.mubr.f32.gmra.mxu0 %v202
      %v351 = vpop.f32.mrf.mxu0
      %v352 = vadd.f32 0.0, %v351
      %v353 = vpop.f32.mrf.mxu0
      %354 = vdwg.mxu0
      %v355 = vmax.f32 %v317, 1e-10
      %v356 = vmax.f32 %v322, 1e-10
      %v357 = vmax.f32 %v327, 1e-10
      %v358 = vmax.f32 %v332, 1e-10
      %v359 = vmax.f32 %v337, 1e-10
      %v360 = vmax.f32 %v342, 1e-10
      %v361 = vmax.f32 %v347, 1e-10
      %v362 = vmax.f32 %v352, 1e-10
      %v363 = vlog2.pop %v355
      %v364 = vmul.f32 %v363, 0.6931472
      %v365 = vlog2.pop %v356
      %v366 = vmul.f32 %v365, 0.6931472
      %v367 = vlog2.pop %v357
      %v368 = vmul.f32 %v367, 0.6931472
      %v369 = vlog2.pop %v358
      %v370 = vmul.f32 %v369, 0.6931472
      %v371 = vlog2.pop %v359
      %v372 = vmul.f32 %v371, 0.6931472
      %v373 = vlog2.pop %v360
      %v374 = vmul.f32 %v373, 0.6931472
      %v375 = vlog2.pop %v361
      %v376 = vmul.f32 %v375, 0.6931472
      %v377 = vlog2.pop %v362
      %v378 = vmul.f32 %v377, 0.6931472
      %v379 = vmul.f32 %v364, 0.4342945
      %v380 = vmul.f32 %v366, 0.4342945
      %v381 = vmul.f32 %v368, 0.4342945
      %v382 = vmul.f32 %v370, 0.4342945
      %v383 = vmul.f32 %v372, 0.4342945
      %v384 = vmul.f32 %v374, 0.4342945
      %v385 = vmul.f32 %v376, 0.4342945
      %v386 = vmul.f32 %v378, 0.4342945
      %v387 = vmul.f32 %v379, 10.0
      %v388 = vmul.f32 %v380, 10.0
      %v389 = vmul.f32 %v381, 10.0
      %v390 = vmul.f32 %v382, 10.0
      %v391 = vmul.f32 %v383, 10.0
      %v392 = vmul.f32 %v384, 10.0
      %v393 = vmul.f32 %v385, 10.0
      %v394 = vmul.f32 %v386, 10.0
      %vm395 = vcmask 523264
      %396 = vst.msk [vmem:[%s182] sm:$0xff] %vm395, %v387
      %397 = vst.msk [vmem:[%s182 + $0x8] sm:$0xff] %vm395, %v388
      %398 = vst.msk [vmem:[%s182 + $0x10] sm:$0xff] %vm395, %v389
      %399 = vst.msk [vmem:[%s182 + $0x18] sm:$0xff] %vm395, %v390
      %400 = vst.msk [vmem:[%s182 + $0x20] sm:$0xff] %vm395, %v391
      %401 = vst.msk [vmem:[%s182 + $0x28] sm:$0xff] %vm395, %v392
      %402 = vst.msk [vmem:[%s182 + $0x30] sm:$0xff] %vm395, %v393
      %403 = vst.msk [vmem:[%s182 + $0x38] sm:$0xff] %vm395, %v394
      %v404 = vsel %vm395, %v387, -inf
      %v405 = vsel %vm395, %v388, -inf
      %v406 = vsel %vm395, %v389, -inf
      %v407 = vsel %vm395, %v390, -inf
      %v408 = vsel %vm395, %v391, -inf
      %v409 = vmax.f32 %v404, %v408
      %v410 = vsel %vm395, %v392, -inf
      %v411 = vmax.f32 %v405, %v410
      %v412 = vsel %vm395, %v393, -inf
      %v413 = vmax.f32 %v406, %v412
      %v414 = vsel %vm395, %v394, -inf
      %v415 = vmax.f32 %v407, %v414
      %v416 = vmax.f32 %v409, %v411
      %v417 = vmax.f32 %v413, %v415
      %v418 = vmax.f32 %v416, %v417
      %v419 = vrot.slane %v418, 4
      %v420 = vmax.f32 %v418, %v419
      %v421 = vrot.slane %v420, 2
      %v422 = vmax.f32 %v420, %v421
      %v423 = vrot.slane %v422, 1
      %v424 = vmax.f32 %v422, %v423
      %425 = vst.msk [vmem:[%s187] sm:$0xff] %vm395, %v424
      %s426 = smul.u32 8, %s15
      %p427 = scmp.lt.s32.totalorder %s426, 15
      %s428 = scalar_select %p427, %s426, 15
      %s429 = smul.addr %s428, 8
      %s430 = scalar_lea.vmem %s2, %s429
      %p431 = scmp.lt.s32.totalorder %s15, 1
      %s432 = scalar_select %p431, %s15, 1
      %s433 = smul.addr %s432, 8
      %s434 = scalar_lea.vmem %s3, %s433
      // Predicated region
      $region29: #{logmel_filterbank.2} parent=27 // pred_check
        %p435 = pneg %p80
      $region30: #{logmel_filterbank.2} parent=27 // pred_check_branch
        %437 = sbr.rel (%p435) target = $region32
      $region31: #{logmel_filterbank.2} parent=27 // pred_region
        %s438 = smul.u32 8, %s15
      $region32: #{logmel_filterbank.2} parent=27 // pred_fallthru
        _
      // Predicated region
      $region33: #{logmel_filterbank.2} parent=27 // pred_check
        %p439 = pneg %p106
      $region34: #{logmel_filterbank.2} parent=27 // pred_check_branch
        %441 = sbr.rel (%p439) target = $region36
      $region35: #{logmel_filterbank.2} parent=27 // pred_region
        _
      $region36: #{logmel_filterbank.2} parent=27 // pred_fallthru
        _
    $region28: #{logmel_filterbank.2} parent=5 // pred_fallthru
      _
    %p442 = scmp.le.s32.totalorder 2, %s10
    // Predicated region
    $region37: #{logmel_filterbank.2} parent=5 // pred_check
      %p443 = pneg %p442
    $region38: #{logmel_filterbank.2} parent=5 // pred_check_branch
      %445 = sbr.rel (%p443) target = $region40
    $region39: #{logmel_filterbank.2} parent=5 // pred_region
      %s446 = ssub.s32 %s10, 2
      // Predicated region
      $region41: #{logmel_filterbank.2} parent=39 // pred_check
        %p447 = pneg %p86
      $region42: #{logmel_filterbank.2} parent=39 // pred_check_branch
        %449 = sbr.rel (%p447) target = $region44
      $region43: #{logmel_filterbank.2} parent=39 // pred_region
        %s450 = smul.u32 8, %s16
        %p451 = scmp.lt.s32.totalorder %s450, 15
        %s452 = scalar_select %p451, %s450, 15
        %s453 = smul.addr %s452, 8
        %s454 = scalar_lea.vmem %s2, %s453
      $region44: #{logmel_filterbank.2} parent=39 // pred_fallthru
        _
      // Predicated region
      $region45: #{logmel_filterbank.2} parent=39 // pred_check
        %p455 = pneg %p112
      $region46: #{logmel_filterbank.2} parent=39 // pred_check_branch
        %457 = sbr.rel (%p455) target = $region48
      $region47: #{logmel_filterbank.2} parent=39 // pred_region
        %p458 = scmp.lt.s32.totalorder %s16, 1
        %s459 = scalar_select %p458, %s16, 1
        %s460 = smul.addr %s459, 8
        %s461 = scalar_lea.vmem %s3, %s460
      $region48: #{logmel_filterbank.2} parent=39 // pred_fallthru
        _
    $region40: #{logmel_filterbank.2} parent=5 // pred_fallthru
      _
  $region6: #{logmel_filterbank.2} parent=0 // loop_footer
    %s14 = sadd.s32 1, %s10
  $region7: #{logmel_filterbank.2} parent=0 // loop_footer_branch
    %9 = sbr.rel target = $region3
  $region8: #{logmel_filterbank.2} parent=0 // loop_exit
    _

</llo_original>
